<compile_context>
chip_gen: v5e
topology: v5e:2x2
jax: 0.10.0
libtpu: 0.0.40
codegen_flags: <defaults>
</compile_context>

<pallas_src>
import jax
import jax.numpy as jnp
from jax.experimental import pallas as pl
from jax.experimental.pallas import tpu as pltpu


def _decoder_kernel(x_ref, wtc_ref, btr_ref, w1s_ref, b1r_ref, w2s_ref, b2r_ref, out_ref):
    """Fused ConvTranspose2d(k=2, s=2, p=0) + ResidualBlock for ONE image (grid over batch).

    x_ref   : (H, W*Cin)            rows=h, lanes=(w,ci)
    wtc_ref : (W*Cin, 2*W2*Cout)    block-diag ConvT weight, planes di=0,1 concatenated on lanes
    btr_ref : (1, W2*Cout)          ConvT bias tiled over w2
    w1s/w2s : (3*W2*Cout, W2*Cout)  3x3-conv weights: kh taps stacked along K, banded over (w,kw)
    b1r/b2r : (1, W2*Cout)
    out_ref : (2, H, W2*Cout)       de-interleaved output planes (di, h, (w2,co))
    """
    H = x_ref.shape[0]
    L = out_ref.shape[-1]
    f32 = jnp.float32

    # --- ConvTranspose2d: one MXU matmul; both sub-pixel row planes come out on lanes ---
    x = x_ref[...]
    y = jnp.dot(x, wtc_ref[...], preferred_element_type=f32)
    btr = btr_ref[...]
    t0 = y[:, :L] + btr          # image rows 2h
    t1 = y[:, L:] + btr          # image rows 2h+1

    # Boundary masks for the row-neighbour rolls (top / bottom image row -> zero padding).
    row_id = jax.lax.broadcasted_iota(jnp.int32, (H, L), 0)
    first_row = row_id == 0
    last_row = row_id == H - 1

    def conv3x3(a0, a1, ws_ref, br_ref):
        # padding=1 3x3 conv on the two row planes, as ONE matmul:
        #   plane0 row h = image row 2h   : kh taps are rows 2h-1 (a1 shifted up), 2h, 2h+1
        #   plane1 row h = image row 2h+1 : kh taps are rows 2h, 2h+1, 2h+2 (a0 shifted down)
        # kw taps + width zero-padding are baked into the banded lane weights (stacked by kh).
        a1_prev = jnp.where(first_row, 0.0, pltpu.roll(a1, shift=1, axis=0))      # row h <- a1[h-1]
        a0_next = jnp.where(last_row, 0.0, pltpu.roll(a0, shift=H - 1, axis=0))   # row h <- a0[h+1]
        lhs0 = jnp.concatenate([a1_prev, a0, a1], axis=-1)       # (H, 3L)  kh = 0,1,2 for plane 0
        lhs1 = jnp.concatenate([a0, a1, a0_next], axis=-1)       # (H, 3L)  kh = 0,1,2 for plane 1
        lhs = jnp.concatenate([lhs0, lhs1], axis=0)              # (2H, 3L) planes stacked along M
        o = jnp.dot(lhs, ws_ref[...], preferred_element_type=f32) + br_ref[...]
        return o[:H], o[H:]

    # ResidualBlock: relu(t + conv(relu(conv(t))))
    h0, h1 = conv3x3(t0, t1, w1s_ref, b1r_ref)
    h0 = jnp.maximum(h0, 0.0)
    h1 = jnp.maximum(h1, 0.0)
    g0, g1 = conv3x3(h0, h1, w2s_ref, b2r_ref)
    out_ref[0] = jnp.maximum(t0 + g0, 0.0).astype(out_ref.dtype)
    out_ref[1] = jnp.maximum(t1 + g1, 0.0).astype(out_ref.dtype)
    # NOTE: DecoderBlock.activation (ReLU) is defined but unused in forward().


def prepare_decoder_params(params, W):
    """One-time weight restructuring (hoisted out of the per-call path)."""
    wt, bt, w1, b1, w2, b2 = params
    Cin, Cout = wt.shape[0], wt.shape[1]
    W2 = 2 * W
    K = W * Cin
    L = W2 * Cout
    f32 = jnp.float32

    # ConvT weight (Cin, Cout, 2, 2): per sub-pixel row plane di a block-diagonal
    # (W*Cin, W2*Cout) matrix (input pixel w -> output columns 2w, 2w+1); planes concat on lanes.
    b_blk = jnp.transpose(wt, (2, 0, 3, 1)).reshape(2, Cin, 2 * Cout).astype(f32)  # (di, ci, dj*Cout+co)
    eye_w = jnp.eye(W, dtype=f32)
    wt_planes = jnp.einsum('wv,dck->dwcvk', eye_w, b_blk).reshape(2, K, L)
    wtc = jnp.concatenate([wt_planes[0], wt_planes[1]], axis=1)                    # (K, 2L)
    btr = jnp.tile(bt.astype(f32), W2)[None, :]                                    # (1, L)

    # 3x3 conv weights (Cout, Cout, 3, 3) -> banded lane matrices per kh, stacked along K:
    #   ws[kh*L + w_in*C + ci, w_out*C + co] = w[co, ci, kh, kw] with kw = w_in - w_out + 1
    # (width zero-padding falls out of the band structure).
    def banded_stack(w):
        wk = jnp.transpose(w, (2, 3, 1, 0)).astype(f32)                            # (kh, kw, ci, co)
        d = jnp.stack([jnp.eye(W2, k=1 - kw, dtype=f32) for kw in range(3)])       # (kw, w_in, w_out)
        return jnp.einsum('kuv,hkic->huivc', d, wk).reshape(3 * L, L)

    w1s = banded_stack(w1)
    w2s = banded_stack(w2)
    b1r = jnp.tile(b1.astype(f32), W2)[None, :]
    b2r = jnp.tile(b2.astype(f32), W2)[None, :]
    return (wtc, btr, w1s, b1r, w2s, b2r)


def decoder_block(x_nchw, prepared):
    """Forward pass of DecoderBlock. x_nchw: (N, Cin, H, W) -> (N, Cout, 2H, 2W)."""
    wtc, btr, w1s, b1r, w2s, b2r = prepared
    N, Cin, H, W = x_nchw.shape
    L = btr.shape[-1]
    Cout = L // (2 * W)
    H2, W2 = 2 * H, 2 * W
    NH = N * H
    K = W * Cin
    f32 = jnp.float32

    # glue: NCHW -> rows (n,h), lanes (w,ci)
    x2 = jnp.transpose(x_nchw, (0, 2, 3, 1)).reshape(NH, K).astype(f32)

    out_planes = pl.pallas_call(
        _decoder_kernel,
        out_shape=jax.ShapeDtypeStruct((2, NH, L), f32),
        grid=(N,),
        in_specs=[
            pl.BlockSpec((H, K), lambda n: (n, 0)),          # per-image row block
            pl.BlockSpec((K, 2 * L), lambda n: (0, 0)),      # weights: constant block index,
            pl.BlockSpec((1, L), lambda n: (0, 0)),          # fetched once, stay resident
            pl.BlockSpec((3 * L, L), lambda n: (0, 0)),
            pl.BlockSpec((1, L), lambda n: (0, 0)),
            pl.BlockSpec((3 * L, L), lambda n: (0, 0)),
            pl.BlockSpec((1, L), lambda n: (0, 0)),
        ],
        out_specs=pl.BlockSpec((2, H, L), lambda n: (0, n, 0)),
        compiler_params=pltpu.CompilerParams(dimension_semantics=("parallel",)),
    )(x2, wtc, btr, w1s, b1r, w2s, b2r)

    # glue: de-interleaved row planes -> (N, H2, W2, Cout) -> NCHW
    # (if the downstream consumer accepts NHWC / plane layout, drop these transposes)
    out = out_planes.reshape(2, N, H, W2, Cout)
    out = jnp.transpose(out, (1, 2, 0, 3, 4)).reshape(N, H2, W2, Cout)
    return jnp.transpose(out, (0, 3, 1, 2))


def reference(x, params):
    """Pure-JAX NCHW reference matching the PyTorch module."""
    wt, bt, w1, b1, w2, b2 = params
    dn = ("NCHW", "OIHW", "NCHW")
    # ConvTranspose2d(k=2, s=2, p=0) == conv with flipped kernel, lhs_dilation=2, pad=1
    w_t = jnp.flip(jnp.transpose(wt, (1, 0, 2, 3)), axis=(2, 3))
    t = jax.lax.conv_general_dilated(x, w_t, window_strides=(1, 1),
                                     padding=((1, 1), (1, 1)),
                                     lhs_dilation=(2, 2), dimension_numbers=dn)
    t = t + bt[None, :, None, None]

    def conv3(z, w, b):
        return jax.lax.conv_general_dilated(
            z, w, (1, 1), ((1, 1), (1, 1)), dimension_numbers=dn
        ) + b[None, :, None, None]

    h = jax.nn.relu(conv3(t, w1, b1))
    h = conv3(h, w2, b2)
    return jax.nn.relu(t + h)


if __name__ == "__main__":
    key = jax.random.PRNGKey(0)
    ks = jax.random.split(key, 7)
    N, Cin, Cout, H, W = 2, 16, 8, 8, 8

    x = jax.random.normal(ks[0], (N, Cin, H, W), jnp.float32)
    # ConvTranspose2d weight: (in_channels, out_channels, kH, kW)
    wt = jax.random.normal(ks[1], (Cin, Cout, 2, 2), jnp.float32) * 0.1
    bt = jax.random.normal(ks[2], (Cout,), jnp.float32) * 0.1
    # Conv2d weights: (out_channels, in_channels, 3, 3)
    w1 = jax.random.normal(ks[3], (Cout, Cout, 3, 3), jnp.float32) * 0.1
    b1 = jax.random.normal(ks[4], (Cout,), jnp.float32) * 0.1
    w2 = jax.random.normal(ks[5], (Cout, Cout, 3, 3), jnp.float32) * 0.1
    b2 = jax.random.normal(ks[6], (Cout,), jnp.float32) * 0.1
    params = (wt, bt, w1, b1, w2, b2)

    # Weight restructuring is done once per parameter set (not per forward call).
    prepared = prepare_decoder_params(params, W)

    out = jax.block_until_ready(decoder_block(x, prepared))
    ref = reference(x, params)

    assert out.shape == (N, Cout, 2 * H, 2 * W), out.shape
    assert jnp.allclose(out, ref, atol=1e-4, rtol=1e-4), \
        float(jnp.max(jnp.abs(out - ref)))
    print("KERNEL_OK")
</pallas_src>

<mosaic_0001>
module attributes {stable_mosaic.version = 11 : i64} {
  func.func @_decoder_kernel(%arg0: i32, %arg1: memref<8x128xf32, #tpu.memory_space<vmem>>, %arg2: memref<128x256xf32, #tpu.memory_space<vmem>>, %arg3: memref<1x128xf32, #tpu.memory_space<vmem>>, %arg4: memref<384x128xf32, #tpu.memory_space<vmem>>, %arg5: memref<1x128xf32, #tpu.memory_space<vmem>>, %arg6: memref<384x128xf32, #tpu.memory_space<vmem>>, %arg7: memref<1x128xf32, #tpu.memory_space<vmem>>, %arg8: memref<2x8x128xf32, #tpu.memory_space<vmem>>) attributes {dimension_semantics = [#tpu.dimension_semantics<parallel>], iteration_bounds = array<i64: 2>, scalar_prefetch = 0 : i64, scratch_operands = 0 : i64, tpu.core_type = #tpu.core_type<tc>, window_params = [{transform_indices = @transform_0, window_bounds = array<i64: 8, 128>}, {pipeline_mode = #tpu.pipeline_mode<synchronous>, transform_indices = @transform_1, window_bounds = array<i64: 128, 256>}, {pipeline_mode = #tpu.pipeline_mode<synchronous>, transform_indices = @transform_2, window_bounds = array<i64: 1, 128>}, {pipeline_mode = #tpu.pipeline_mode<synchronous>, transform_indices = @transform_3, window_bounds = array<i64: 384, 128>}, {pipeline_mode = #tpu.pipeline_mode<synchronous>, transform_indices = @transform_4, window_bounds = array<i64: 1, 128>}, {pipeline_mode = #tpu.pipeline_mode<synchronous>, transform_indices = @transform_5, window_bounds = array<i64: 384, 128>}, {pipeline_mode = #tpu.pipeline_mode<synchronous>, transform_indices = @transform_6, window_bounds = array<i64: 1, 128>}, {transform_indices = @transform_7, window_bounds = array<i64: 2, 8, 128>}]} {
    %c0 = arith.constant 0 : index
    %c0_0 = arith.constant 0 : index
    %0 = vector.load %arg1[%c0, %c0_0] : memref<8x128xf32, #tpu.memory_space<vmem>>, vector<8x128xf32>
    %c0_1 = arith.constant 0 : index
    %c0_2 = arith.constant 0 : index
    %1 = vector.load %arg2[%c0_1, %c0_2] : memref<128x256xf32, #tpu.memory_space<vmem>>, vector<128x256xf32>
    %cst = arith.constant dense<0.000000e+00> : vector<8x256xf32>
    %2 = tpu.matmul %0, %1, %cst {dimension_numbers = #tpu.dot_dimension_numbers<[1], [0], [0], [1], [0, 0, 1, 1], [], []>} : vector<8x128xf32>, vector<128x256xf32>, vector<8x256xf32> -> vector<8x256xf32>
    %c0_3 = arith.constant 0 : index
    %c0_4 = arith.constant 0 : index
    %3 = vector.load %arg3[%c0_3, %c0_4] : memref<1x128xf32, #tpu.memory_space<vmem>>, vector<1x128xf32>
    %4 = vector.extract_strided_slice %2 {offsets = [0, 0], sizes = [8, 128], strides = [1, 1]} : vector<8x256xf32> to vector<8x128xf32>
    %5 = vector.broadcast %3 : vector<1x128xf32> to vector<8x128xf32>
    %6 = arith.addf %4, %5 : vector<8x128xf32>
    %7 = vector.extract_strided_slice %2 {offsets = [0, 128], sizes = [8, 128], strides = [1, 1]} : vector<8x256xf32> to vector<8x128xf32>
    %8 = vector.broadcast %3 : vector<1x128xf32> to vector<8x128xf32>
    %9 = arith.addf %7, %8 : vector<8x128xf32>
    %10 = tpu.iota {dimensions = array<i32: 0>} : vector<8x128xi32>
    %c0_i32 = arith.constant 0 : i32
    %11 = vector.broadcast %c0_i32 : i32 to vector<8x128xi32>
    %12 = arith.cmpi eq, %10, %11 : vector<8x128xi32>
    %c7_i32 = arith.constant 7 : i32
    %13 = vector.broadcast %c7_i32 : i32 to vector<8x128xi32>
    %14 = arith.cmpi eq, %10, %13 : vector<8x128xi32>
    %c1_i32 = arith.constant 1 : i32
    %15 = tpu.dynamic_rotate %9 by %c1_i32 dim 0 : vector<8x128xf32>, i32 -> vector<8x128xf32>
    %cst_5 = arith.constant 0.000000e+00 : f32
    %16 = vector.broadcast %cst_5 : f32 to vector<8x128xf32>
    %17 = arith.select %12, %16, %15 : vector<8x128xi1>, vector<8x128xf32>
    %c7_i32_6 = arith.constant 7 : i32
    %18 = tpu.dynamic_rotate %6 by %c7_i32_6 dim 0 : vector<8x128xf32>, i32 -> vector<8x128xf32>
    %cst_7 = arith.constant 0.000000e+00 : f32
    %19 = vector.broadcast %cst_7 : f32 to vector<8x128xf32>
    %20 = arith.select %14, %19, %18 : vector<8x128xi1>, vector<8x128xf32>
    %21 = tpu.concatenate %17, %6, %9 in 1 : vector<8x128xf32>, vector<8x128xf32>, vector<8x128xf32> -> vector<8x384xf32>
    %22 = tpu.concatenate %6, %9, %20 in 1 : vector<8x128xf32>, vector<8x128xf32>, vector<8x128xf32> -> vector<8x384xf32>
    %23 = tpu.concatenate %21, %22 in 0 : vector<8x384xf32>, vector<8x384xf32> -> vector<16x384xf32>
    %c0_8 = arith.constant 0 : index
    %c0_9 = arith.constant 0 : index
    %24 = vector.load %arg4[%c0_8, %c0_9] : memref<384x128xf32, #tpu.memory_space<vmem>>, vector<384x128xf32>
    %cst_10 = arith.constant dense<0.000000e+00> : vector<16x128xf32>
    %25 = tpu.matmul %23, %24, %cst_10 {dimension_numbers = #tpu.dot_dimension_numbers<[1], [0], [0], [1], [0, 0, 1, 1], [], []>} : vector<16x384xf32>, vector<384x128xf32>, vector<16x128xf32> -> vector<16x128xf32>
    %c0_11 = arith.constant 0 : index
    %c0_12 = arith.constant 0 : index
    %26 = vector.load %arg5[%c0_11, %c0_12] : memref<1x128xf32, #tpu.memory_space<vmem>>, vector<1x128xf32>
    %27 = vector.broadcast %26 : vector<1x128xf32> to vector<16x128xf32>
    %28 = arith.addf %25, %27 : vector<16x128xf32>
    %29 = vector.extract_strided_slice %28 {offsets = [0, 0], sizes = [8, 128], strides = [1, 1]} : vector<16x128xf32> to vector<8x128xf32>
    %30 = vector.extract_strided_slice %28 {offsets = [8, 0], sizes = [8, 128], strides = [1, 1]} : vector<16x128xf32> to vector<8x128xf32>
    %cst_13 = arith.constant 0.000000e+00 : f32
    %31 = vector.broadcast %cst_13 : f32 to vector<8x128xf32>
    %32 = arith.maximumf %29, %31 : vector<8x128xf32>
    %cst_14 = arith.constant 0.000000e+00 : f32
    %33 = vector.broadcast %cst_14 : f32 to vector<8x128xf32>
    %34 = arith.maximumf %30, %33 : vector<8x128xf32>
    %c1_i32_15 = arith.constant 1 : i32
    %35 = tpu.dynamic_rotate %34 by %c1_i32_15 dim 0 : vector<8x128xf32>, i32 -> vector<8x128xf32>
    %cst_16 = arith.constant 0.000000e+00 : f32
    %36 = vector.broadcast %cst_16 : f32 to vector<8x128xf32>
    %37 = arith.select %12, %36, %35 : vector<8x128xi1>, vector<8x128xf32>
    %c7_i32_17 = arith.constant 7 : i32
    %38 = tpu.dynamic_rotate %32 by %c7_i32_17 dim 0 : vector<8x128xf32>, i32 -> vector<8x128xf32>
    %cst_18 = arith.constant 0.000000e+00 : f32
    %39 = vector.broadcast %cst_18 : f32 to vector<8x128xf32>
    %40 = arith.select %14, %39, %38 : vector<8x128xi1>, vector<8x128xf32>
    %41 = tpu.concatenate %37, %32, %34 in 1 : vector<8x128xf32>, vector<8x128xf32>, vector<8x128xf32> -> vector<8x384xf32>
    %42 = tpu.concatenate %32, %34, %40 in 1 : vector<8x128xf32>, vector<8x128xf32>, vector<8x128xf32> -> vector<8x384xf32>
    %43 = tpu.concatenate %41, %42 in 0 : vector<8x384xf32>, vector<8x384xf32> -> vector<16x384xf32>
    %c0_19 = arith.constant 0 : index
    %c0_20 = arith.constant 0 : index
    %44 = vector.load %arg6[%c0_19, %c0_20] : memref<384x128xf32, #tpu.memory_space<vmem>>, vector<384x128xf32>
    %cst_21 = arith.constant dense<0.000000e+00> : vector<16x128xf32>
    %45 = tpu.matmul %43, %44, %cst_21 {dimension_numbers = #tpu.dot_dimension_numbers<[1], [0], [0], [1], [0, 0, 1, 1], [], []>} : vector<16x384xf32>, vector<384x128xf32>, vector<16x128xf32> -> vector<16x128xf32>
    %c0_22 = arith.constant 0 : index
    %c0_23 = arith.constant 0 : index
    %46 = vector.load %arg7[%c0_22, %c0_23] : memref<1x128xf32, #tpu.memory_space<vmem>>, vector<1x128xf32>
    %47 = vector.broadcast %46 : vector<1x128xf32> to vector<16x128xf32>
    %48 = arith.addf %45, %47 : vector<16x128xf32>
    %49 = vector.extract_strided_slice %48 {offsets = [0, 0], sizes = [8, 128], strides = [1, 1]} : vector<16x128xf32> to vector<8x128xf32>
    %50 = vector.extract_strided_slice %48 {offsets = [8, 0], sizes = [8, 128], strides = [1, 1]} : vector<16x128xf32> to vector<8x128xf32>
    %51 = arith.addf %6, %49 : vector<8x128xf32>
    %cst_24 = arith.constant 0.000000e+00 : f32
    %52 = vector.broadcast %cst_24 : f32 to vector<8x128xf32>
    %53 = arith.maximumf %51, %52 : vector<8x128xf32>
    %c0_25 = arith.constant 0 : index
    %c0_26 = arith.constant 0 : index
    %c0_27 = arith.constant 0 : index
    %54 = vector.load %arg8[%c0_25, %c0_26, %c0_27] : memref<2x8x128xf32, #tpu.memory_space<vmem>>, vector<1x8x128xf32>
    %55 = vector.shape_cast %54 : vector<1x8x128xf32> to vector<8x128xf32>
    %56 = vector.shape_cast %53 : vector<8x128xf32> to vector<1x8x128xf32>
    tpu.vector_store %arg8[%c0_25, %c0_26, %c0_27], %56 {strides = array<i32>} : memref<2x8x128xf32, #tpu.memory_space<vmem>>, vector<1x8x128xf32>,
    %57 = arith.addf %9, %50 : vector<8x128xf32>
    %cst_28 = arith.constant 0.000000e+00 : f32
    %58 = vector.broadcast %cst_28 : f32 to vector<8x128xf32>
    %59 = arith.maximumf %57, %58 : vector<8x128xf32>
    %c1 = arith.constant 1 : index
    %c0_29 = arith.constant 0 : index
    %c0_30 = arith.constant 0 : index
    %60 = vector.load %arg8[%c1, %c0_29, %c0_30] : memref<2x8x128xf32, #tpu.memory_space<vmem>>, vector<1x8x128xf32>
    %61 = vector.shape_cast %60 : vector<1x8x128xf32> to vector<8x128xf32>
    %62 = vector.shape_cast %59 : vector<8x128xf32> to vector<1x8x128xf32>
    tpu.vector_store %arg8[%c1, %c0_29, %c0_30], %62 {strides = array<i32>} : memref<2x8x128xf32, #tpu.memory_space<vmem>>, vector<1x8x128xf32>,
    return
  }
  func.func @transform_0(%arg0: i32) -> (i32, i32) {
    %c0_i32 = arith.constant 0 : i32
    %c0_i32_0 = arith.constant 0 : i32
    return %arg0, %c0_i32 : i32, i32
  }
  func.func @transform_1(%arg0: i32) -> (i32, i32) {
    %c0_i32 = arith.constant 0 : i32
    %c0_i32_0 = arith.constant 0 : i32
    %c0_i32_1 = arith.constant 0 : i32
    return %c0_i32, %c0_i32_0 : i32, i32
  }
  func.func @transform_2(%arg0: i32) -> (i32, i32) {
    %c0_i32 = arith.constant 0 : i32
    %c0_i32_0 = arith.constant 0 : i32
    %c0_i32_1 = arith.constant 0 : i32
    return %c0_i32, %c0_i32_0 : i32, i32
  }
  func.func @transform_3(%arg0: i32) -> (i32, i32) {
    %c0_i32 = arith.constant 0 : i32
    %c0_i32_0 = arith.constant 0 : i32
    %c0_i32_1 = arith.constant 0 : i32
    return %c0_i32, %c0_i32_0 : i32, i32
  }
  func.func @transform_4(%arg0: i32) -> (i32, i32) {
    %c0_i32 = arith.constant 0 : i32
    %c0_i32_0 = arith.constant 0 : i32
    %c0_i32_1 = arith.constant 0 : i32
    return %c0_i32, %c0_i32_0 : i32, i32
  }
  func.func @transform_5(%arg0: i32) -> (i32, i32) {
    %c0_i32 = arith.constant 0 : i32
    %c0_i32_0 = arith.constant 0 : i32
    %c0_i32_1 = arith.constant 0 : i32
    return %c0_i32, %c0_i32_0 : i32, i32
  }
  func.func @transform_6(%arg0: i32) -> (i32, i32) {
    %c0_i32 = arith.constant 0 : i32
    %c0_i32_0 = arith.constant 0 : i32
    %c0_i32_1 = arith.constant 0 : i32
    return %c0_i32, %c0_i32_0 : i32, i32
  }
  func.func @transform_7(%arg0: i32) -> (i32, i32, i32) {
    %c0_i32 = arith.constant 0 : i32
    %c0_i32_0 = arith.constant 0 : i32
    %c0_i32_1 = arith.constant 0 : i32
    return %c0_i32, %arg0, %c0_i32_0 : i32, i32, i32
  }
}

</mosaic_0001>

<llo_original>
// kernel: tpu_custom_call.1
$region0: #{tpu_custom_call.1}
  #allocation0 [shape = 'u32[]', space=smem, size = 0x4, offset = 0x4, fixed_abs, tag = 'smem constant byte address 0x4 - core index']
  #allocation1 [shape = 'u32[72,128]{1,0:T(1,128)}', space=vmem, size = 0x9000, scoped, tag = 'internal scratch']
  %s0 = inlined_call_operand.hbm [shape: f32[16,128], index: 0, kind: input, shape index: {}]
  %s1 = inlined_call_operand.hbm [shape: f32[128,256], index: 1, kind: input, shape index: {}]
  %s2 = inlined_call_operand.vmem [shape: f32[1,128], index: 2, kind: input, shape index: {}]
  %s3 = inlined_call_operand.hbm [shape: f32[384,128], index: 3, kind: input, shape index: {}]
  %s4 = inlined_call_operand.vmem [shape: f32[1,128], index: 4, kind: input, shape index: {}]
  %s5 = inlined_call_operand.hbm [shape: f32[384,128], index: 5, kind: input, shape index: {}]
  %s6 = inlined_call_operand.vmem [shape: f32[1,128], index: 6, kind: input, shape index: {}]
  %s7 = inlined_call_operand.hbm [shape: f32[2,16,128], index: 7, kind: output, shape index: {}]
  %s8 = sld [smem:[#allocation0]]
  $region77: #{tpu_custom_call.1} parent=0
    _
  %s10 = ssub.s32 1, %s8
  %s11 = scalar_select 0, %s10, %s8
  $region1: #{tpu_custom_call.1} parent=0
    #allocation2 [shape = 'u8[8192]{0}', space=vmem, size = 0x2000, scoped, tag = 'input window, operand 0']
    #allocation3 [shape = 's32[2]{0}', space=sflag, size = 0x8, scoped, tag = 'scoped memory for tpu_custom_call.1']
    #allocation4 [shape = 's32[2]{0}', space=sflag, size = 0x8, scoped, tag = 'scoped memory for tpu_custom_call.1']
    #allocation5 [shape = 'u8[131072]{0}', space=vmem, size = 0x20000, scoped, tag = 'input window, operand 1, single buffered']
    #allocation6 [shape = 's32[1]{0}', space=sflag, size = 0x4, scoped, tag = 'scoped memory for tpu_custom_call.1']
    #allocation7 [shape = 'u8[196608]{0}', space=vmem, size = 0x30000, scoped, tag = 'input window, operand 3, single buffered']
    #allocation8 [shape = 'u8[196608]{0}', space=vmem, size = 0x30000, scoped, tag = 'input window, operand 5, single buffered']
    #allocation9 [shape = 's32[1]{0}', space=sflag, size = 0x4, scoped, tag = 'scoped memory for tpu_custom_call.1']
    #allocation10 [shape = 'u8[16384]{0}', space=vmem, size = 0x4000, scoped, tag = 'output window, operand 0']
    %12 = vsyncpa [#allocation3], 0
    %s13 = scalar_lea.sflag [#allocation3], 1
    %14 = vsyncpa %s13, 0
    %15 = vsyncpa [#allocation6], 0
    %16 = vsyncpa [#allocation9], 0
    %17 = vsyncpa [#allocation4], 0
    %s18 = scalar_lea.sflag [#allocation4], 1
    %19 = vsyncpa %s18, 0
    loop: start=0, step=1, limit=4
    $region2: #{tpu_custom_call.1} parent=1 // loop_pre_header
      _
    $region3: #{tpu_custom_call.1} parent=1 // loop_header
      %s21 = sphi 0, %s25
      %p22 = scmp.ge.s32.totalorder %s21, 4
      %s31 = sphi 0, %s33
      %s34 = sphi 0, %s31
      %s35 = sphi 0, %s34
      %s51 = sphi 0, %s35
      %s55 = sphi 0, %s55
      %s57 = sphi 0, %s55
      %s58 = sphi 0, %s57
      %s72 = sphi 0, %s58
      %s76 = sphi 0, %s76
      %s78 = sphi 0, %s76
      %s79 = sphi 0, %s78
      %s93 = sphi 0, %s79
      %s97 = sphi 0, %s97
      %s99 = sphi 0, %s97
      %s100 = sphi 0, %s99
      %s114 = sphi 0, %s100
      %s118 = sphi 0, %s118
      %s120 = sphi 0, %s118
      %s121 = sphi 0, %s120
      %s135 = sphi 0, %s121
      %s139 = sphi 0, %s139
      %s141 = sphi 0, %s139
      %s142 = sphi 0, %s141
      %s156 = sphi 0, %s142
      %s160 = sphi 0, %s160
      %s162 = sphi 0, %s160
      %s163 = sphi 0, %s162
      %s177 = sphi 0, %s163
      %s183 = sphi 0, %s185
      %s186 = sphi 0, %s183
      %s187 = sphi 0, %s186
      %s203 = sphi 0, %s187
    $region4: #{tpu_custom_call.1} parent=1 // loop_header_branch
      %24 = sbr.rel (%p22) target = $region8
    $region5: #{tpu_custom_call.1} parent=1 // loop_body
      %s26 = ssub.s32 %s21, 1
      %s27 = ssub.s32 %s21, 2
      %s28 = sadd.s32 %s21, 1
      %s29 = ssub.s32 %s21, %s28
      %p30 = scmp.eq.s32.totalorder %s29, 0
      %s32 = sadd.s32 %s31, 1
      %s33 = scalar_select %p30, %s31, %s32
      %p36 = pneg %p30
      %p37 = scmp.eq.s32.totalorder %s21, 1
      %p38 = por %p36, %p37
      %p39 = scmp.ne.s32.totalorder %s31, %s34
      %p40 = scmp.eq.s32.totalorder %s21, 0
      %p41 = por %p39, %p40
      %p42 = scmp.ne.s32.totalorder %s31, %s34
      %p43 = scmp.eq.s32.totalorder %s26, 1
      %p44 = por %p42, %p43
      %p45 = scmp.ne.s32.totalorder %s34, %s35
      %p46 = scmp.eq.s32.totalorder %s26, 0
      %p47 = por %p45, %p46
      %p48 = scmp.ne.s32.totalorder %s34, %s35
      %p49 = scmp.eq.s32.totalorder %s27, 1
      %p50 = por %p48, %p49
      %p52 = scmp.ne.s32.totalorder %s35, %s51
      %p53 = scmp.eq.s32.totalorder %s27, 0
      %p54 = por %p52, %p53
      %s56 = sadd.s32 %s55, 1
      %p59 = scmp.eq.s32.totalorder %s21, 1
      %p60 = scmp.ne.s32.totalorder %s55, %s57
      %p61 = scmp.eq.s32.totalorder %s21, 0
      %p62 = por %p60, %p61
      %p63 = scmp.ne.s32.totalorder %s55, %s57
      %p64 = scmp.eq.s32.totalorder %s26, 1
      %p65 = por %p63, %p64
      %p66 = scmp.ne.s32.totalorder %s57, %s58
      %p67 = scmp.eq.s32.totalorder %s26, 0
      %p68 = por %p66, %p67
      %p69 = scmp.ne.s32.totalorder %s57, %s58
      %p70 = scmp.eq.s32.totalorder %s27, 1
      %p71 = por %p69, %p70
      %p73 = scmp.ne.s32.totalorder %s58, %s72
      %p74 = scmp.eq.s32.totalorder %s27, 0
      %p75 = por %p73, %p74
      %s77 = sadd.s32 %s76, 1
      %p80 = scmp.eq.s32.totalorder %s21, 1
      %p81 = scmp.ne.s32.totalorder %s76, %s78
      %p82 = scmp.eq.s32.totalorder %s21, 0
      %p83 = por %p81, %p82
      %p84 = scmp.ne.s32.totalorder %s76, %s78
      %p85 = scmp.eq.s32.totalorder %s26, 1
      %p86 = por %p84, %p85
      %p87 = scmp.ne.s32.totalorder %s78, %s79
      %p88 = scmp.eq.s32.totalorder %s26, 0
      %p89 = por %p87, %p88
      %p90 = scmp.ne.s32.totalorder %s78, %s79
      %p91 = scmp.eq.s32.totalorder %s27, 1
      %p92 = por %p90, %p91
      %p94 = scmp.ne.s32.totalorder %s79, %s93
      %p95 = scmp.eq.s32.totalorder %s27, 0
      %p96 = por %p94, %p95
      %s98 = sadd.s32 %s97, 1
      %p101 = scmp.eq.s32.totalorder %s21, 1
      %p102 = scmp.ne.s32.totalorder %s97, %s99
      %p103 = scmp.eq.s32.totalorder %s21, 0
      %p104 = por %p102, %p103
      %p105 = scmp.ne.s32.totalorder %s97, %s99
      %p106 = scmp.eq.s32.totalorder %s26, 1
      %p107 = por %p105, %p106
      %p108 = scmp.ne.s32.totalorder %s99, %s100
      %p109 = scmp.eq.s32.totalorder %s26, 0
      %p110 = por %p108, %p109
      %p111 = scmp.ne.s32.totalorder %s99, %s100
      %p112 = scmp.eq.s32.totalorder %s27, 1
      %p113 = por %p111, %p112
      %p115 = scmp.ne.s32.totalorder %s100, %s114
      %p116 = scmp.eq.s32.totalorder %s27, 0
      %p117 = por %p115, %p116
      %s119 = sadd.s32 %s118, 1
      %p122 = scmp.eq.s32.totalorder %s21, 1
      %p123 = scmp.ne.s32.totalorder %s118, %s120
      %p124 = scmp.eq.s32.totalorder %s21, 0
      %p125 = por %p123, %p124
      %p126 = scmp.ne.s32.totalorder %s118, %s120
      %p127 = scmp.eq.s32.totalorder %s26, 1
      %p128 = por %p126, %p127
      %p129 = scmp.ne.s32.totalorder %s120, %s121
      %p130 = scmp.eq.s32.totalorder %s26, 0
      %p131 = por %p129, %p130
      %p132 = scmp.ne.s32.totalorder %s120, %s121
      %p133 = scmp.eq.s32.totalorder %s27, 1
      %p134 = por %p132, %p133
      %p136 = scmp.ne.s32.totalorder %s121, %s135
      %p137 = scmp.eq.s32.totalorder %s27, 0
      %p138 = por %p136, %p137
      %s140 = sadd.s32 %s139, 1
      %p143 = scmp.eq.s32.totalorder %s21, 1
      %p144 = scmp.ne.s32.totalorder %s139, %s141
      %p145 = scmp.eq.s32.totalorder %s21, 0
      %p146 = por %p144, %p145
      %p147 = scmp.ne.s32.totalorder %s139, %s141
      %p148 = scmp.eq.s32.totalorder %s26, 1
      %p149 = por %p147, %p148
      %p150 = scmp.ne.s32.totalorder %s141, %s142
      %p151 = scmp.eq.s32.totalorder %s26, 0
      %p152 = por %p150, %p151
      %p153 = scmp.ne.s32.totalorder %s141, %s142
      %p154 = scmp.eq.s32.totalorder %s27, 1
      %p155 = por %p153, %p154
      %p157 = scmp.ne.s32.totalorder %s142, %s156
      %p158 = scmp.eq.s32.totalorder %s27, 0
      %p159 = por %p157, %p158
      %s161 = sadd.s32 %s160, 1
      %p164 = scmp.eq.s32.totalorder %s21, 1
      %p165 = scmp.ne.s32.totalorder %s160, %s162
      %p166 = scmp.eq.s32.totalorder %s21, 0
      %p167 = por %p165, %p166
      %p168 = scmp.ne.s32.totalorder %s160, %s162
      %p169 = scmp.eq.s32.totalorder %s26, 1
      %p170 = por %p168, %p169
      %p171 = scmp.ne.s32.totalorder %s162, %s163
      %p172 = scmp.eq.s32.totalorder %s26, 0
      %p173 = por %p171, %p172
      %p174 = scmp.ne.s32.totalorder %s162, %s163
      %p175 = scmp.eq.s32.totalorder %s27, 1
      %p176 = por %p174, %p175
      %p178 = scmp.ne.s32.totalorder %s163, %s177
      %p179 = scmp.eq.s32.totalorder %s27, 0
      %p180 = por %p178, %p179
      %s181 = ssub.s32 %s21, %s28
      %p182 = scmp.eq.s32.totalorder %s181, 0
      %s184 = sadd.s32 %s183, 1
      %s185 = scalar_select %p182, %s183, %s184
      %p188 = pneg %p182
      %p189 = scmp.eq.s32.totalorder %s21, 1
      %p190 = por %p188, %p189
      %p191 = scmp.ne.s32.totalorder %s183, %s186
      %p192 = scmp.eq.s32.totalorder %s21, 0
      %p193 = por %p191, %p192
      %p194 = scmp.ne.s32.totalorder %s183, %s186
      %p195 = scmp.eq.s32.totalorder %s26, 1
      %p196 = por %p194, %p195
      %p197 = scmp.ne.s32.totalorder %s186, %s187
      %p198 = scmp.eq.s32.totalorder %s26, 0
      %p199 = por %p197, %p198
      %p200 = scmp.ne.s32.totalorder %s186, %s187
      %p201 = scmp.eq.s32.totalorder %s27, 1
      %p202 = por %p200, %p201
      %p204 = scmp.ne.s32.totalorder %s187, %s203
      %p205 = scmp.eq.s32.totalorder %s27, 0
      %p206 = por %p204, %p205
      %p207 = scmp.le.s32.totalorder 1, %s21
      %p208 = scmp.lt.s32.totalorder %s21, 3
      %p209 = pnand %p207, %p208
      %p210 = pneg %p209
      // Predicated region
      $region9: #{tpu_custom_call.1} parent=5 // pred_check
        _
      $region10: #{tpu_custom_call.1} parent=5 // pred_check_branch
        %212 = sbr.rel (%p209) target = $region12
      $region11: #{tpu_custom_call.1} parent=5 // pred_region
        %s213 = ssub.s32 %s21, 1
        // Predicated region
        $region13: #{tpu_custom_call.1} parent=11 // pred_check
          %p214 = pneg %p68
        $region14: #{tpu_custom_call.1} parent=11 // pred_check_branch
          %216 = sbr.rel (%p214) target = $region16
        $region15: #{tpu_custom_call.1} parent=11 // pred_region
          %218 = vsyncadd [#allocation6], 0
          %s219 = sshll.u32 %s1, 4
          %s220 = int_to_ptr.hbm [resolvable:$true] %s219
          %s221 = sshll.u32 [#allocation5], 4
          %s222 = int_to_ptr.vmem [resolvable:$true] %s221
          %227 = dma.hbm_to_vmem [thread:$0]  %s220, 4096, %s222, [#allocation6], 256, 256, 16
        $region16: #{tpu_custom_call.1} parent=11 // pred_fallthru
          _
        // Predicated region
        $region17: #{tpu_custom_call.1} parent=11 // pred_check
          %p228 = pneg %p89
        $region18: #{tpu_custom_call.1} parent=11 // pred_check_branch
          %230 = sbr.rel (%p228) target = $region20
        $region19: #{tpu_custom_call.1} parent=11 // pred_region
          _
        $region20: #{tpu_custom_call.1} parent=11 // pred_fallthru
          _
        // Predicated region
        $region21: #{tpu_custom_call.1} parent=11 // pred_check
          %p231 = pneg %p110
        $region22: #{tpu_custom_call.1} parent=11 // pred_check_branch
          %233 = sbr.rel (%p231) target = $region24
        $region23: #{tpu_custom_call.1} parent=11 // pred_region
          %235 = vsyncadd [#allocation6], 0
          %s236 = sshll.u32 %s3, 4
          %s237 = int_to_ptr.hbm [resolvable:$true] %s236
          %s238 = sshll.u32 [#allocation7], 4
          %s239 = int_to_ptr.vmem [resolvable:$true] %s238
          %244 = dma.hbm_to_vmem [thread:$0]  %s237, 6144, %s239, [#allocation6], 128, 128, 8
        $region24: #{tpu_custom_call.1} parent=11 // pred_fallthru
          _
        // Predicated region
        $region25: #{tpu_custom_call.1} parent=11 // pred_check
          %p245 = pneg %p131
        $region26: #{tpu_custom_call.1} parent=11 // pred_check_branch
          %247 = sbr.rel (%p245) target = $region28
        $region27: #{tpu_custom_call.1} parent=11 // pred_region
          _
        $region28: #{tpu_custom_call.1} parent=11 // pred_fallthru
          _
        // Predicated region
        $region29: #{tpu_custom_call.1} parent=11 // pred_check
          %p248 = pneg %p152
        $region30: #{tpu_custom_call.1} parent=11 // pred_check_branch
          %250 = sbr.rel (%p248) target = $region32
        $region31: #{tpu_custom_call.1} parent=11 // pred_region
          %252 = vsyncadd [#allocation9], 0
          %s253 = sshll.u32 %s5, 4
          %s254 = int_to_ptr.hbm [resolvable:$true] %s253
          %s255 = sshll.u32 [#allocation8], 4
          %s256 = int_to_ptr.vmem [resolvable:$true] %s255
          %261 = dma.hbm_to_vmem [thread:$0]  %s254, 6144, %s256, [#allocation9], 128, 128, 8
        $region32: #{tpu_custom_call.1} parent=11 // pred_fallthru
          _
        // Predicated region
        $region33: #{tpu_custom_call.1} parent=11 // pred_check
          %p262 = pneg %p173
        $region34: #{tpu_custom_call.1} parent=11 // pred_check_branch
          %264 = sbr.rel (%p262) target = $region36
        $region35: #{tpu_custom_call.1} parent=11 // pred_region
          _
        $region36: #{tpu_custom_call.1} parent=11 // pred_fallthru
          _
      $region12: #{tpu_custom_call.1} parent=5 // pred_fallthru
        _
      %p265 = scmp.lt.s32.totalorder %s21, 2
      // Predicated region
      $region37: #{tpu_custom_call.1} parent=5 // pred_check
        %p266 = pneg %p265
      $region38: #{tpu_custom_call.1} parent=5 // pred_check_branch
        %268 = sbr.rel (%p266) target = $region40
      $region39: #{tpu_custom_call.1} parent=5 // pred_region
        // Predicated region
        $region41: #{tpu_custom_call.1} parent=39 // pred_check
          %p269 = pneg %p41
        $region42: #{tpu_custom_call.1} parent=39 // pred_check_branch
          %271 = sbr.rel (%p269) target = $region44
        $region43: #{tpu_custom_call.1} parent=39 // pred_region
          %s272 = sand.u32 %s31, 1
          %s273 = scalar_lea.sflag [#allocation3], %s272
          %s274 = sand.u32 %s31, 1
          %s275 = smul.addr %s274, 8
          %s276 = scalar_lea.vmem [#allocation2], %s275
          %278 = vsyncadd %s273, 0
          %s279 = smul.addr %s21, 8
          %s280 = scalar_lea.hbm %s0, %s279
          %s282 = sshll.u32 %s280, 4
          %s283 = int_to_ptr.hbm [resolvable:$true] %s282
          %s284 = sshll.u32 %s276, 4
          %s285 = int_to_ptr.vmem [resolvable:$true] %s284
          %287 = dma.hbm_to_vmem [thread:$0]  %s283, 128, %s285, %s273
        $region44: #{tpu_custom_call.1} parent=39 // pred_fallthru
          _
      $region40: #{tpu_custom_call.1} parent=5 // pred_fallthru
        _
      %p288 = scmp.le.s32.totalorder 1, %s21
      %p289 = scmp.lt.s32.totalorder %s21, 3
      %p290 = pnand %p288, %p289
      %p291 = pneg %p290
      // Predicated region
      $region45: #{tpu_custom_call.1} parent=5 // pred_check
        _
      $region46: #{tpu_custom_call.1} parent=5 // pred_check_branch
        %293 = sbr.rel (%p290) target = $region48
      $region47: #{tpu_custom_call.1} parent=5 // pred_region
        %s294 = ssub.s32 %s21, 1
        %s295 = sand.u32 %s34, 1
        %s296 = scalar_lea.sflag [#allocation3], %s295
        %s297 = sand.u32 %s34, 1
        %s298 = smul.addr %s297, 8
        %s299 = scalar_lea.vmem [#allocation2], %s298
        // Predicated region
        $region49: #{tpu_custom_call.1} parent=47 // pred_check
          %p300 = pneg %p47
        $region50: #{tpu_custom_call.1} parent=47 // pred_check_branch
          %302 = sbr.rel (%p300) target = $region52
        $region51: #{tpu_custom_call.1} parent=47 // pred_region
          %304 = dma.done %s296, 128
        $region52: #{tpu_custom_call.1} parent=47 // pred_fallthru
          _
        // Predicated region
        $region53: #{tpu_custom_call.1} parent=47 // pred_check
          %p305 = pneg %p68
        $region54: #{tpu_custom_call.1} parent=47 // pred_check_branch
          %307 = sbr.rel (%p305) target = $region56
        $region55: #{tpu_custom_call.1} parent=47 // pred_region
          %309 = dma.done [#allocation6], 4096
        $region56: #{tpu_custom_call.1} parent=47 // pred_fallthru
          _
        // Predicated region
        $region57: #{tpu_custom_call.1} parent=47 // pred_check
          %p310 = pneg %p110
        $region58: #{tpu_custom_call.1} parent=47 // pred_check_branch
          %312 = sbr.rel (%p310) target = $region60
        $region59: #{tpu_custom_call.1} parent=47 // pred_region
          %314 = dma.done [#allocation6], 6144
        $region60: #{tpu_custom_call.1} parent=47 // pred_fallthru
          _
        // Predicated region
        $region61: #{tpu_custom_call.1} parent=47 // pred_check
          %p315 = pneg %p152
        $region62: #{tpu_custom_call.1} parent=47 // pred_check_branch
          %317 = sbr.rel (%p315) target = $region64
        $region63: #{tpu_custom_call.1} parent=47 // pred_region
          %319 = dma.done [#allocation9], 6144
        $region64: #{tpu_custom_call.1} parent=47 // pred_fallthru
          _
        %s320 = sand.u32 %s34, 1
        %s321 = scalar_lea.sflag [#allocation3], %s320
        %s322 = sand.u32 %s34, 1
        %s323 = smul.addr %s322, 8
        %s324 = scalar_lea.vmem [#allocation2], %s323
        %p325 = pneg %p47
        %p326 = pneg %p44
        %p327 = pneg %p68
        %p328 = pneg %p65
        %p329 = pneg %p89
        %p330 = pneg %p86
        %p331 = pneg %p110
        %p332 = pneg %p107
        %p333 = pneg %p131
        %p334 = pneg %p128
        %p335 = pneg %p152
        %p336 = pneg %p149
        %p337 = pneg %p173
        %p338 = pneg %p170
        %p339 = pneg %p199
        %p340 = pneg %p196
        %s341 = sand.u32 %s186, 1
        %s342 = scalar_lea.sflag [#allocation4], %s341
        %s343 = sand.u32 %s186, 1
        %s344 = smul.addr %s343, 16
        %s345 = scalar_lea.vmem [#allocation10], %s344
        %v346 = vld [vmem:[%s299] sm:$0xff]
        %v347 = vld [vmem:[#allocation5] sm:$0xff]
        %v348 = vld [vmem:[#allocation5 + $0x8] sm:$0xff]
        %v349 = vld [vmem:[#allocation5 + $0x10] sm:$0xff]
        %v350 = vld [vmem:[#allocation5 + $0x18] sm:$0xff]
        %v351 = vld [vmem:[#allocation5 + $0x20] sm:$0xff]
        %v352 = vld [vmem:[#allocation5 + $0x28] sm:$0xff]
        %v353 = vld [vmem:[#allocation5 + $0x30] sm:$0xff]
        %v354 = vld [vmem:[#allocation5 + $0x38] sm:$0xff]
        %v355 = vld [vmem:[#allocation5 + $0x40] sm:$0xff]
        %v356 = vld [vmem:[#allocation5 + $0x48] sm:$0xff]
        %v357 = vld [vmem:[#allocation5 + $0x50] sm:$0xff]
        %v358 = vld [vmem:[#allocation5 + $0x58] sm:$0xff]
        %v359 = vld [vmem:[#allocation5 + $0x60] sm:$0xff]
        %v360 = vld [vmem:[#allocation5 + $0x68] sm:$0xff]
        %v361 = vld [vmem:[#allocation5 + $0x70] sm:$0xff]
        %v362 = vld [vmem:[#allocation5 + $0x78] sm:$0xff]
        %v363 = vld [vmem:[#allocation5 + $0x80] sm:$0xff]
        %v364 = vld [vmem:[#allocation5 + $0x88] sm:$0xff]
        %v365 = vld [vmem:[#allocation5 + $0x90] sm:$0xff]
        %v366 = vld [vmem:[#allocation5 + $0x98] sm:$0xff]
        %v367 = vld [vmem:[#allocation5 + $0xa0] sm:$0xff]
        %v368 = vld [vmem:[#allocation5 + $0xa8] sm:$0xff]
        %v369 = vld [vmem:[#allocation5 + $0xb0] sm:$0xff]
        %v370 = vld [vmem:[#allocation5 + $0xb8] sm:$0xff]
        %v371 = vld [vmem:[#allocation5 + $0xc0] sm:$0xff]
        %v372 = vld [vmem:[#allocation5 + $0xc8] sm:$0xff]
        %v373 = vld [vmem:[#allocation5 + $0xd0] sm:$0xff]
        %v374 = vld [vmem:[#allocation5 + $0xd8] sm:$0xff]
        %v375 = vld [vmem:[#allocation5 + $0xe0] sm:$0xff]
        %v376 = vld [vmem:[#allocation5 + $0xe8] sm:$0xff]
        %v377 = vld [vmem:[#allocation5 + $0xf0] sm:$0xff]
        %v378 = vld [vmem:[#allocation5 + $0xf8] sm:$0xff]
        %379 = vmatpush.msra.mxu0 %v377
        %380 = vmatpush.msra.mxu0 %v375
        %381 = vmatpush.msra.mxu0 %v373
        %382 = vmatpush.msra.mxu0 %v371
        %383 = vmatpush.msra.mxu0 %v369
        %384 = vmatpush.msra.mxu0 %v367
        %385 = vmatpush.msra.mxu0 %v365
        %386 = vmatpush.msra.mxu0 %v363
        %387 = vmatpush.msra.mxu0 %v361
        %388 = vmatpush.msra.mxu0 %v359
        %389 = vmatpush.msra.mxu0 %v357
        %390 = vmatpush.msra.mxu0 %v355
        %391 = vmatpush.msra.mxu0 %v353
        %392 = vmatpush.msra.mxu0 %v351
        %393 = vmatpush.msra.mxu0 %v349
        %394 = vmatpush.msra.mxu0 %v347
        %395 = vmatmul.f32.gmra.mxu0 %v346
        %v396 = vpop.f32.mrf.mxu0
        %v397 = vadd.f32 0.0, %v396
        %398 = vdwg.mxu0
        %399 = vmatpush.msra.mxu0 %v378
        %400 = vmatpush.msra.mxu0 %v376
        %401 = vmatpush.msra.mxu0 %v374
        %402 = vmatpush.msra.mxu0 %v372
        %403 = vmatpush.msra.mxu0 %v370
        %404 = vmatpush.msra.mxu0 %v368
        %405 = vmatpush.msra.mxu0 %v366
        %406 = vmatpush.msra.mxu0 %v364
        %407 = vmatpush.msra.mxu0 %v362
        %408 = vmatpush.msra.mxu0 %v360
        %409 = vmatpush.msra.mxu0 %v358
        %410 = vmatpush.msra.mxu0 %v356
        %411 = vmatpush.msra.mxu0 %v354
        %412 = vmatpush.msra.mxu0 %v352
        %413 = vmatpush.msra.mxu0 %v350
        %414 = vmatpush.msra.mxu0 %v348
        %415 = vmatmul.f32.gmra.mxu0 %v346
        %v416 = vpop.f32.mrf.mxu0
        %v417 = vadd.f32 0.0, %v416
        %418 = vdwg.mxu0
        %v419 = vld [vmem:[%s2] sm:$0x1]
        %v421 = vperm.slane %v419, 0
        %v423 = vadd.f32 %v397, %v421
        %v424 = vadd.f32 %v417, %v421
        %v425 = vlaneseq
        %v426 = vshrl.u32 %v425, 7
        %vm427 = vcmp.eq.s32.totalorder %v426, 0
        %vm428 = vcmp.eq.s32.totalorder %v426, 7
        %v429 = vrot.slane %v424, 7
        %v430 = vsel %vm427, 0.0, %v429
        %v431 = vrot.slane %v423, 1
        %v432 = vsel %vm428, 0.0, %v431
        %v433 = vld [vmem:[#allocation7] sm:$0xff]
        %v434 = vld [vmem:[#allocation7 + $0x8] sm:$0xff]
        %v435 = vld [vmem:[#allocation7 + $0x10] sm:$0xff]
        %v436 = vld [vmem:[#allocation7 + $0x18] sm:$0xff]
        %v437 = vld [vmem:[#allocation7 + $0x20] sm:$0xff]
        %v438 = vld [vmem:[#allocation7 + $0x28] sm:$0xff]
        %v439 = vld [vmem:[#allocation7 + $0x30] sm:$0xff]
        %v440 = vld [vmem:[#allocation7 + $0x38] sm:$0xff]
        %v441 = vld [vmem:[#allocation7 + $0x40] sm:$0xff]
        %v442 = vld [vmem:[#allocation7 + $0x48] sm:$0xff]
        %v443 = vld [vmem:[#allocation7 + $0x50] sm:$0xff]
        %v444 = vld [vmem:[#allocation7 + $0x58] sm:$0xff]
        %v445 = vld [vmem:[#allocation7 + $0x60] sm:$0xff]
        %v446 = vld [vmem:[#allocation7 + $0x68] sm:$0xff]
        %v447 = vld [vmem:[#allocation7 + $0x70] sm:$0xff]
        %v448 = vld [vmem:[#allocation7 + $0x78] sm:$0xff]
        %v449 = vld [vmem:[#allocation7 + $0x80] sm:$0xff]
        %v450 = vld [vmem:[#allocation7 + $0x88] sm:$0xff]
        %v451 = vld [vmem:[#allocation7 + $0x90] sm:$0xff]
        %v452 = vld [vmem:[#allocation7 + $0x98] sm:$0xff]
        %v453 = vld [vmem:[#allocation7 + $0xa0] sm:$0xff]
        %v454 = vld [vmem:[#allocation7 + $0xa8] sm:$0xff]
        %v455 = vld [vmem:[#allocation7 + $0xb0] sm:$0xff]
        %v456 = vld [vmem:[#allocation7 + $0xb8] sm:$0xff]
        %v457 = vld [vmem:[#allocation7 + $0xc0] sm:$0xff]
        %v458 = vld [vmem:[#allocation7 + $0xc8] sm:$0xff]
        %v459 = vld [vmem:[#allocation7 + $0xd0] sm:$0xff]
        %v460 = vld [vmem:[#allocation7 + $0xd8] sm:$0xff]
        %v461 = vld [vmem:[#allocation7 + $0xe0] sm:$0xff]
        %v462 = vld [vmem:[#allocation7 + $0xe8] sm:$0xff]
        %v463 = vld [vmem:[#allocation7 + $0xf0] sm:$0xff]
        %v464 = vld [vmem:[#allocation7 + $0xf8] sm:$0xff]
        %v465 = vld [vmem:[#allocation7 + $0x100] sm:$0xff]
        %v466 = vld [vmem:[#allocation7 + $0x108] sm:$0xff]
        %v467 = vld [vmem:[#allocation7 + $0x110] sm:$0xff]
        %v468 = vld [vmem:[#allocation7 + $0x118] sm:$0xff]
        %v469 = vld [vmem:[#allocation7 + $0x120] sm:$0xff]
        %v470 = vld [vmem:[#allocation7 + $0x128] sm:$0xff]
        %v471 = vld [vmem:[#allocation7 + $0x130] sm:$0xff]
        %v472 = vld [vmem:[#allocation7 + $0x138] sm:$0xff]
        %v473 = vld [vmem:[#allocation7 + $0x140] sm:$0xff]
        %v474 = vld [vmem:[#allocation7 + $0x148] sm:$0xff]
        %v475 = vld [vmem:[#allocation7 + $0x150] sm:$0xff]
        %v476 = vld [vmem:[#allocation7 + $0x158] sm:$0xff]
        %v477 = vld [vmem:[#allocation7 + $0x160] sm:$0xff]
        %v478 = vld [vmem:[#allocation7 + $0x168] sm:$0xff]
        %v479 = vld [vmem:[#allocation7 + $0x170] sm:$0xff]
        %v480 = vld [vmem:[#allocation7 + $0x178] sm:$0xff]
        %v481 = vld [vmem:[%s4] sm:$0x1]
        %v483 = vperm.slane %v481, 0
        %485 = vmatpush.msra.mxu0 %v448
        %486 = vmatpush.msra.mxu0 %v447
        %487 = vmatpush.msra.mxu0 %v446
        %488 = vmatpush.msra.mxu0 %v445
        %489 = vmatpush.msra.mxu0 %v444
        %490 = vmatpush.msra.mxu0 %v443
        %491 = vmatpush.msra.mxu0 %v442
        %492 = vmatpush.msra.mxu0 %v441
        %493 = vmatpush.msra.mxu0 %v440
        %494 = vmatpush.msra.mxu0 %v439
        %495 = vmatpush.msra.mxu0 %v438
        %496 = vmatpush.msra.mxu0 %v437
        %497 = vmatpush.msra.mxu0 %v436
        %498 = vmatpush.msra.mxu0 %v435
        %499 = vmatpush.msra.mxu0 %v434
        %500 = vmatpush.msra.mxu0 %v433
        %501 = vmatmul.f32.gmra.mxu0 %v430
        %v502 = vpop.f32.mrf.mxu0
        %v503 = vadd.f32 %v483, %v502
        %504 = vmatmul.f32.gmra.mxu0 %v423
        %v505 = vpop.f32.mrf.mxu0
        %v506 = vadd.f32 %v483, %v505
        %507 = vdwg.mxu0
        %508 = vmatpush.msra.mxu0 %v464
        %509 = vmatpush.msra.mxu0 %v463
        %510 = vmatpush.msra.mxu0 %v462
        %511 = vmatpush.msra.mxu0 %v461
        %512 = vmatpush.msra.mxu0 %v460
        %513 = vmatpush.msra.mxu0 %v459
        %514 = vmatpush.msra.mxu0 %v458
        %515 = vmatpush.msra.mxu0 %v457
        %516 = vmatpush.msra.mxu0 %v456
        %517 = vmatpush.msra.mxu0 %v455
        %518 = vmatpush.msra.mxu0 %v454
        %519 = vmatpush.msra.mxu0 %v453
        %520 = vmatpush.msra.mxu0 %v452
        %521 = vmatpush.msra.mxu0 %v451
        %522 = vmatpush.msra.mxu0 %v450
        %523 = vmatpush.msra.mxu0 %v449
        %524 = vmatmul.f32.gmra.mxu0 %v423
        %v525 = vpop.f32.mrf.mxu0
        %v526 = vadd.f32 %v503, %v525
        %527 = vmatmul.f32.gmra.mxu0 %v424
        %v528 = vpop.f32.mrf.mxu0
        %v529 = vadd.f32 %v506, %v528
        %530 = vdwg.mxu0
        %531 = vmatpush.msra.mxu0 %v480
        %532 = vmatpush.msra.mxu0 %v479
        %533 = vmatpush.msra.mxu0 %v478
        %534 = vmatpush.msra.mxu0 %v477
        %535 = vmatpush.msra.mxu0 %v476
        %536 = vmatpush.msra.mxu0 %v475
        %537 = vmatpush.msra.mxu0 %v474
        %538 = vmatpush.msra.mxu0 %v473
        %539 = vmatpush.msra.mxu0 %v472
        %540 = vmatpush.msra.mxu0 %v471
        %541 = vmatpush.msra.mxu0 %v470
        %542 = vmatpush.msra.mxu0 %v469
        %543 = vmatpush.msra.mxu0 %v468
        %544 = vmatpush.msra.mxu0 %v467
        %545 = vmatpush.msra.mxu0 %v466
        %546 = vmatpush.msra.mxu0 %v465
        %547 = vmatmul.f32.gmra.mxu0 %v424
        %v548 = vpop.f32.mrf.mxu0
        %v549 = vadd.f32 %v526, %v548
        %550 = vmatmul.f32.gmra.mxu0 %v432
        %v551 = vpop.f32.mrf.mxu0
        %v552 = vadd.f32 %v529, %v551
        %553 = vdwg.mxu0
        %v554 = vmax.f32 %v549, 0.0
        %v555 = vmax.f32 %v552, 0.0
        %v556 = vrot.slane %v555, 7
        %v557 = vsel %vm427, 0.0, %v556
        %v558 = vrot.slane %v554, 1
        %v559 = vsel %vm428, 0.0, %v558
        %v560 = vld [vmem:[#allocation8] sm:$0xff]
        %v561 = vld [vmem:[#allocation8 + $0x8] sm:$0xff]
        %v562 = vld [vmem:[#allocation8 + $0x10] sm:$0xff]
        %v563 = vld [vmem:[#allocation8 + $0x18] sm:$0xff]
        %v564 = vld [vmem:[#allocation8 + $0x20] sm:$0xff]
        %v565 = vld [vmem:[#allocation8 + $0x28] sm:$0xff]
        %v566 = vld [vmem:[#allocation8 + $0x30] sm:$0xff]
        %v567 = vld [vmem:[#allocation8 + $0x38] sm:$0xff]
        %v568 = vld [vmem:[#allocation8 + $0x40] sm:$0xff]
        %v569 = vld [vmem:[#allocation8 + $0x48] sm:$0xff]
        %v570 = vld [vmem:[#allocation8 + $0x50] sm:$0xff]
        %v571 = vld [vmem:[#allocation8 + $0x58] sm:$0xff]
        %v572 = vld [vmem:[#allocation8 + $0x60] sm:$0xff]
        %v573 = vld [vmem:[#allocation8 + $0x68] sm:$0xff]
        %v574 = vld [vmem:[#allocation8 + $0x70] sm:$0xff]
        %v575 = vld [vmem:[#allocation8 + $0x78] sm:$0xff]
        %v576 = vld [vmem:[#allocation8 + $0x80] sm:$0xff]
        %v577 = vld [vmem:[#allocation8 + $0x88] sm:$0xff]
        %v578 = vld [vmem:[#allocation8 + $0x90] sm:$0xff]
        %v579 = vld [vmem:[#allocation8 + $0x98] sm:$0xff]
        %v580 = vld [vmem:[#allocation8 + $0xa0] sm:$0xff]
        %v581 = vld [vmem:[#allocation8 + $0xa8] sm:$0xff]
        %v582 = vld [vmem:[#allocation8 + $0xb0] sm:$0xff]
        %v583 = vld [vmem:[#allocation8 + $0xb8] sm:$0xff]
        %v584 = vld [vmem:[#allocation8 + $0xc0] sm:$0xff]
        %v585 = vld [vmem:[#allocation8 + $0xc8] sm:$0xff]
        %v586 = vld [vmem:[#allocation8 + $0xd0] sm:$0xff]
        %v587 = vld [vmem:[#allocation8 + $0xd8] sm:$0xff]
        %v588 = vld [vmem:[#allocation8 + $0xe0] sm:$0xff]
        %v589 = vld [vmem:[#allocation8 + $0xe8] sm:$0xff]
        %v590 = vld [vmem:[#allocation8 + $0xf0] sm:$0xff]
        %v591 = vld [vmem:[#allocation8 + $0xf8] sm:$0xff]
        %v592 = vld [vmem:[#allocation8 + $0x100] sm:$0xff]
        %v593 = vld [vmem:[#allocation8 + $0x108] sm:$0xff]
        %v594 = vld [vmem:[#allocation8 + $0x110] sm:$0xff]
        %v595 = vld [vmem:[#allocation8 + $0x118] sm:$0xff]
        %v596 = vld [vmem:[#allocation8 + $0x120] sm:$0xff]
        %v597 = vld [vmem:[#allocation8 + $0x128] sm:$0xff]
        %v598 = vld [vmem:[#allocation8 + $0x130] sm:$0xff]
        %v599 = vld [vmem:[#allocation8 + $0x138] sm:$0xff]
        %v600 = vld [vmem:[#allocation8 + $0x140] sm:$0xff]
        %v601 = vld [vmem:[#allocation8 + $0x148] sm:$0xff]
        %v602 = vld [vmem:[#allocation8 + $0x150] sm:$0xff]
        %v603 = vld [vmem:[#allocation8 + $0x158] sm:$0xff]
        %v604 = vld [vmem:[#allocation8 + $0x160] sm:$0xff]
        %v605 = vld [vmem:[#allocation8 + $0x168] sm:$0xff]
        %v606 = vld [vmem:[#allocation8 + $0x170] sm:$0xff]
        %v607 = vld [vmem:[#allocation8 + $0x178] sm:$0xff]
        %v608 = vld [vmem:[%s6] sm:$0x1]
        %v610 = vperm.slane %v608, 0
        %612 = vmatpush.msra.mxu0 %v575
        %613 = vmatpush.msra.mxu0 %v574
        %614 = vmatpush.msra.mxu0 %v573
        %615 = vmatpush.msra.mxu0 %v572
        %616 = vmatpush.msra.mxu0 %v571
        %617 = vmatpush.msra.mxu0 %v570
        %618 = vmatpush.msra.mxu0 %v569
        %619 = vmatpush.msra.mxu0 %v568
        %620 = vmatpush.msra.mxu0 %v567
        %621 = vmatpush.msra.mxu0 %v566
        %622 = vmatpush.msra.mxu0 %v565
        %623 = vmatpush.msra.mxu0 %v564
        %624 = vmatpush.msra.mxu0 %v563
        %625 = vmatpush.msra.mxu0 %v562
        %626 = vmatpush.msra.mxu0 %v561
        %627 = vmatpush.msra.mxu0 %v560
        %628 = vmatmul.f32.gmra.mxu0 %v557
        %v629 = vpop.f32.mrf.mxu0
        %v630 = vadd.f32 %v610, %v629
        %631 = vmatmul.f32.gmra.mxu0 %v554
        %v632 = vpop.f32.mrf.mxu0
        %v633 = vadd.f32 %v610, %v632
        %634 = vdwg.mxu0
        %635 = vmatpush.msra.mxu0 %v591
        %636 = vmatpush.msra.mxu0 %v590
        %637 = vmatpush.msra.mxu0 %v589
        %638 = vmatpush.msra.mxu0 %v588
        %639 = vmatpush.msra.mxu0 %v587
        %640 = vmatpush.msra.mxu0 %v586
        %641 = vmatpush.msra.mxu0 %v585
        %642 = vmatpush.msra.mxu0 %v584
        %643 = vmatpush.msra.mxu0 %v583
        %644 = vmatpush.msra.mxu0 %v582
        %645 = vmatpush.msra.mxu0 %v581
        %646 = vmatpush.msra.mxu0 %v580
        %647 = vmatpush.msra.mxu0 %v579
        %648 = vmatpush.msra.mxu0 %v578
        %649 = vmatpush.msra.mxu0 %v577
        %650 = vmatpush.msra.mxu0 %v576
        %651 = vmatmul.f32.gmra.mxu0 %v554
        %v652 = vpop.f32.mrf.mxu0
        %v653 = vadd.f32 %v630, %v652
        %654 = vmatmul.f32.gmra.mxu0 %v555
        %v655 = vpop.f32.mrf.mxu0
        %v656 = vadd.f32 %v633, %v655
        %657 = vdwg.mxu0
        %658 = vmatpush.msra.mxu0 %v607
        %659 = vmatpush.msra.mxu0 %v606
        %660 = vmatpush.msra.mxu0 %v605
        %661 = vmatpush.msra.mxu0 %v604
        %662 = vmatpush.msra.mxu0 %v603
        %663 = vmatpush.msra.mxu0 %v602
        %664 = vmatpush.msra.mxu0 %v601
        %665 = vmatpush.msra.mxu0 %v600
        %666 = vmatpush.msra.mxu0 %v599
        %667 = vmatpush.msra.mxu0 %v598
        %668 = vmatpush.msra.mxu0 %v597
        %669 = vmatpush.msra.mxu0 %v596
        %670 = vmatpush.msra.mxu0 %v595
        %671 = vmatpush.msra.mxu0 %v594
        %672 = vmatpush.msra.mxu0 %v593
        %673 = vmatpush.msra.mxu0 %v592
        %674 = vmatmul.f32.gmra.mxu0 %v555
        %v675 = vpop.f32.mrf.mxu0
        %v676 = vadd.f32 %v653, %v675
        %677 = vmatmul.f32.gmra.mxu0 %v559
        %v678 = vpop.f32.mrf.mxu0
        %v679 = vadd.f32 %v656, %v678
        %680 = vdwg.mxu0
        %v681 = vadd.f32 %v423, %v676
        %v682 = vmax.f32 %v681, 0.0
        %683 = vst [vmem:[%s345] sm:$0xff] %v682
        %v684 = vadd.f32 %v424, %v679
        %v685 = vmax.f32 %v684, 0.0
        %s686 = scalar_lea.vmem %s345, 8 [#allocation10]
        %687 = vst [vmem:[%s686] sm:$0xff] %v685
        %s688 = sand.u32 %s186, 1
        %s689 = scalar_lea.sflag [#allocation4], %s688
        %s690 = sand.u32 %s186, 1
        %s691 = smul.addr %s690, 16
        %s692 = scalar_lea.vmem [#allocation10], %s691
        // Predicated region
        $region65: #{tpu_custom_call.1} parent=47 // pred_check
          %p693 = pneg %p196
        $region66: #{tpu_custom_call.1} parent=47 // pred_check_branch
          %695 = sbr.rel (%p693) target = $region68
        $region67: #{tpu_custom_call.1} parent=47 // pred_region
          %697 = vsyncadd %s689, 0
          %s698 = smul.addr %s26, 8
          %s699 = scalar_lea.hbm %s7, %s698
          %s700 = sshll.u32 %s692, 4
          %s701 = int_to_ptr.vmem [resolvable:$true] %s700
          %s702 = sshll.u32 %s699, 4
          %s703 = int_to_ptr.hbm [resolvable:$true] %s702
          %708 = dma.vmem_to_hbm [thread:$0]  %s701, 256, %s703, %s689, 128, 256, 8
        $region68: #{tpu_custom_call.1} parent=47 // pred_fallthru
          _
      $region48: #{tpu_custom_call.1} parent=5 // pred_fallthru
        _
      %p709 = scmp.le.s32.totalorder 2, %s21
      // Predicated region
      $region69: #{tpu_custom_call.1} parent=5 // pred_check
        %p710 = pneg %p709
      $region70: #{tpu_custom_call.1} parent=5 // pred_check_branch
        %712 = sbr.rel (%p710) target = $region72
      $region71: #{tpu_custom_call.1} parent=5 // pred_region
        %s713 = ssub.s32 %s21, 2
        // Predicated region
        $region73: #{tpu_custom_call.1} parent=71 // pred_check
          %p714 = pneg %p202
        $region74: #{tpu_custom_call.1} parent=71 // pred_check_branch
          %716 = sbr.rel (%p714) target = $region76
        $region75: #{tpu_custom_call.1} parent=71 // pred_region
          %s717 = sand.u32 %s187, 1
          %s718 = scalar_lea.sflag [#allocation4], %s717
          %s719 = sand.u32 %s187, 1
          %s720 = smul.addr %s719, 16
          %s721 = scalar_lea.vmem [#allocation10], %s720
          %723 = dma.done %s718, 256
        $region76: #{tpu_custom_call.1} parent=71 // pred_fallthru
          _
      $region72: #{tpu_custom_call.1} parent=5 // pred_fallthru
        _
    $region6: #{tpu_custom_call.1} parent=1 // loop_footer
      %s25 = sadd.s32 1, %s21
    $region7: #{tpu_custom_call.1} parent=1 // loop_footer_branch
      %20 = sbr.rel target = $region3
    $region8: #{tpu_custom_call.1} parent=1 // loop_exit
      _
    %724 = vsyncpa [#allocation3], 1
    %s725 = scalar_lea.sflag [#allocation3], 1
    %726 = vsyncpa %s725, 1
    %727 = vsyncpa [#allocation6], 1
    %728 = vsyncpa [#allocation9], 1
    %729 = vsyncpa [#allocation4], 1
    %s730 = scalar_lea.sflag [#allocation4], 1
    %731 = vsyncpa %s730, 1

</llo_original>
